<compile_context>
chip_gen: v5e
topology: v5e:2x2
jax: 0.10.0
libtpu: 0.0.40
codegen_flags: <defaults>
</compile_context>

<pallas_src>
import jax
import jax.numpy as jnp
from jax.experimental import pallas as pl
from jax.experimental.pallas import tpu as pltpu


def _se_kernel(x_ref, w1_ref, b1_ref, w2_ref, b2_ref, o_ref):
    # x_ref block: (TB, C, L)
    x = x_ref[...]
    # Squeeze: sum over L in f32 (the 1/L of the mean is pre-folded into w1).
    m = jnp.sum(x.astype(jnp.float32), axis=-1)                        # (TB, C)
    # fc1 (1x1 conv), batched over the TB samples of this block.
    h = jnp.dot(m, w1_ref[...], preferred_element_type=jnp.float32) + b1_ref[...]
    h = jnp.maximum(h, 0.0)                                            # (TB, Cr)
    # fc2 (1x1 conv), batched.
    s = jnp.dot(h, w2_ref[...], preferred_element_type=jnp.float32) + b2_ref[...]
    s = jax.nn.sigmoid(s)                                              # (TB, C)
    # Excite: broadcast the gate over L; multiply in the input dtype so bf16
    # inputs stay bf16 on the VPU (v6e/v7x); for f32 inputs this is unchanged.
    o_ref[...] = (x * s.astype(x.dtype)[:, :, None]).astype(o_ref.dtype)


def squeeze_excitation(x, w1, b1, w2, b2, *, block_batch=None):
    """SE forward. x: (B, C, L); w1: (Cr, C); b1: (Cr,); w2: (C, Cr); b2: (C,)."""
    B, C, L = x.shape
    Cr = w1.shape[0]

    # Host-side parameter prep (cheap, traced once under jit):
    w1k = (w1.astype(jnp.float32) * (1.0 / L)).T      # (C, Cr), mean scale folded in
    b1k = b1.astype(jnp.float32).reshape(1, Cr)       # lane-major bias
    w2k = w2.astype(jnp.float32).T                    # (Cr, C)
    b2k = b2.astype(jnp.float32).reshape(1, C)        # lane-major bias

    # Batch-tile sizing: aim for ~4 MiB input blocks (big enough to approach the
    # HBM roofline; small enough that 2x(in)+2x(out) double-buffering plus
    # weights fits every generation's VMEM, including v7x's 64 MiB), but keep
    # >= 2 grid steps when B >= 2 so both v7x TensorCores get work.
    bytes_per_sample = C * L * x.dtype.itemsize
    tb_budget = max(1, (4 << 20) // max(bytes_per_sample, 1))
    if block_batch is None:
        block_batch = max(1, min(tb_budget, pl.cdiv(B, 2), B))
    TB = int(min(block_batch, B))
    grid = (pl.cdiv(B, TB),)

    block_bytes = TB * C * L * x.dtype.itemsize
    vmem_limit = int(max(4 * block_bytes + (2 << 20), 16 << 20))

    # TODO(synk): for extreme C*L where even a single (1, C, L) sample exceeds
    # the VMEM budget, add an "arbitrary" L grid axis with a scratch sum
    # accumulator and a second excite pass; not needed for these sizes.
    return pl.pallas_call(
        _se_kernel,
        out_shape=jax.ShapeDtypeStruct((B, C, L), x.dtype),
        grid_spec=pltpu.PrefetchScalarGridSpec(
            num_scalar_prefetch=0,
            grid=grid,
            in_specs=[
                pl.BlockSpec((TB, C, L), lambda b: (b, 0, 0)),
                pl.BlockSpec((C, Cr), lambda b: (0, 0)),
                pl.BlockSpec((1, Cr), lambda b: (0, 0)),
                pl.BlockSpec((Cr, C), lambda b: (0, 0)),
                pl.BlockSpec((1, C), lambda b: (0, 0)),
            ],
            out_specs=pl.BlockSpec((TB, C, L), lambda b: (b, 0, 0)),
        ),
        compiler_params=pltpu.CompilerParams(
            dimension_semantics=("parallel",),
            vmem_limit_bytes=vmem_limit,
        ),
    )(x, w1k, b1k, w2k, b2k)


def squeeze_excitation_ref(x, w1, b1, w2, b2):
    """Pure-JAX reference with identical semantics to the PyTorch module."""
    m = jnp.mean(x.astype(jnp.float32), axis=-1)                       # (B, C)
    h = jnp.maximum(m @ w1.astype(jnp.float32).T + b1[None, :], 0.0)   # (B, Cr)
    s = jax.nn.sigmoid(h @ w2.astype(jnp.float32).T + b2[None, :])     # (B, C)
    return (x * s[:, :, None].astype(x.dtype)).astype(x.dtype)


if __name__ == "__main__":
    def run_case(key, B, C, L, reduction=16):
        Cr = max(C // reduction, 1)
        kx, kw1, kb1, kw2, kb2 = jax.random.split(key, 5)
        x = jax.random.normal(kx, (B, C, L), dtype=jnp.float32)
        # Conv1d(kernel_size=1) weights squeezed to 2-D matrices; 1-D biases.
        w1 = jax.random.normal(kw1, (Cr, C), dtype=jnp.float32) * 0.5
        b1 = jax.random.normal(kb1, (Cr,), dtype=jnp.float32) * 0.1
        w2 = jax.random.normal(kw2, (C, Cr), dtype=jnp.float32) * 0.5
        b2 = jax.random.normal(kb2, (C,), dtype=jnp.float32) * 0.1

        out = jax.block_until_ready(squeeze_excitation(x, w1, b1, w2, b2))
        ref = jax.block_until_ready(squeeze_excitation_ref(x, w1, b1, w2, b2))
        assert out.shape == (B, C, L)
        assert jnp.allclose(out, ref, atol=1e-5, rtol=1e-5), (
            f"mismatch vs reference for (B,C,L)=({B},{C},{L})")

    root = jax.random.PRNGKey(0)
    k1, k2, k3 = jax.random.split(root, 3)
    run_case(k1, B=2, C=4, L=16)     # module toy config (channels=4, reduction=16)
    run_case(k2, B=16, C=8, L=128)   # lane-dense L, fused batch tile (TB=8, grid=2)
    run_case(k3, B=5, C=4, L=16)     # non-divisible batch -> partial last block

    print("KERNEL_OK")
</pallas_src>

<mosaic_0001>
module attributes {stable_mosaic.version = 11 : i64} {
  func.func @_se_kernel(%arg0: i32, %arg1: memref<1x4x16xf32, #tpu.memory_space<vmem>>, %arg2: memref<4x1xf32, #tpu.memory_space<vmem>>, %arg3: memref<1x1xf32, #tpu.memory_space<vmem>>, %arg4: memref<1x4xf32, #tpu.memory_space<vmem>>, %arg5: memref<1x4xf32, #tpu.memory_space<vmem>>, %arg6: memref<1x4x16xf32, #tpu.memory_space<vmem>>) attributes {dimension_semantics = [#tpu.dimension_semantics<parallel>], iteration_bounds = array<i64: 2>, scalar_prefetch = 0 : i64, scratch_operands = 0 : i64, tpu.core_type = #tpu.core_type<tc>, window_params = [{transform_indices = @transform_0, window_bounds = array<i64: 1, 4, 16>}, {pipeline_mode = #tpu.pipeline_mode<synchronous>, transform_indices = @transform_1, window_bounds = array<i64: 4, 1>}, {pipeline_mode = #tpu.pipeline_mode<synchronous>, transform_indices = @transform_2, window_bounds = array<i64: 1, 1>}, {pipeline_mode = #tpu.pipeline_mode<synchronous>, transform_indices = @transform_3, window_bounds = array<i64: 1, 4>}, {pipeline_mode = #tpu.pipeline_mode<synchronous>, transform_indices = @transform_4, window_bounds = array<i64: 1, 4>}, {transform_indices = @transform_5, window_bounds = array<i64: 1, 4, 16>}]} {
    %c0 = arith.constant 0 : index
    %c0_0 = arith.constant 0 : index
    %c0_1 = arith.constant 0 : index
    %0 = vector.load %arg1[%c0, %c0_0, %c0_1] : memref<1x4x16xf32, #tpu.memory_space<vmem>>, vector<1x4x16xf32>
    %cst = arith.constant dense<0.000000e+00> : vector<1x4xf32>
    %1 = vector.multi_reduction <add>, %0, %cst [2] : vector<1x4x16xf32> to vector<1x4xf32>
    %c0_2 = arith.constant 0 : index
    %c0_3 = arith.constant 0 : index
    %2 = vector.load %arg2[%c0_2, %c0_3] : memref<4x1xf32, #tpu.memory_space<vmem>>, vector<4x1xf32>
    %cst_4 = arith.constant dense<0.000000e+00> : vector<1x1xf32>
    %3 = tpu.matmul %1, %2, %cst_4 {dimension_numbers = #tpu.dot_dimension_numbers<[1], [0], [0], [1], [0, 0, 1, 1], [], []>} : vector<1x4xf32>, vector<4x1xf32>, vector<1x1xf32> -> vector<1x1xf32>
    %c0_5 = arith.constant 0 : index
    %c0_6 = arith.constant 0 : index
    %4 = vector.load %arg3[%c0_5, %c0_6] : memref<1x1xf32, #tpu.memory_space<vmem>>, vector<1x1xf32>
    %5 = arith.addf %3, %4 : vector<1x1xf32>
    %cst_7 = arith.constant 0.000000e+00 : f32
    %6 = vector.broadcast %cst_7 : f32 to vector<1x1xf32>
    %7 = arith.maximumf %5, %6 : vector<1x1xf32>
    %c0_8 = arith.constant 0 : index
    %c0_9 = arith.constant 0 : index
    %8 = vector.load %arg4[%c0_8, %c0_9] : memref<1x4xf32, #tpu.memory_space<vmem>>, vector<1x4xf32>
    %cst_10 = arith.constant dense<0.000000e+00> : vector<1x4xf32>
    %9 = tpu.matmul %7, %8, %cst_10 {dimension_numbers = #tpu.dot_dimension_numbers<[1], [0], [0], [1], [0, 0, 1, 1], [], []>} : vector<1x1xf32>, vector<1x4xf32>, vector<1x4xf32> -> vector<1x4xf32>
    %c0_11 = arith.constant 0 : index
    %c0_12 = arith.constant 0 : index
    %10 = vector.load %arg5[%c0_11, %c0_12] : memref<1x4xf32, #tpu.memory_space<vmem>>, vector<1x4xf32>
    %11 = arith.addf %9, %10 : vector<1x4xf32>
    %12 = arith.negf %11 : vector<1x4xf32>
    %13 = math.exp %12 : vector<1x4xf32>
    %cst_13 = arith.constant 1.000000e+00 : f32
    %14 = vector.broadcast %cst_13 : f32 to vector<1x4xf32>
    %15 = arith.addf %14, %13 : vector<1x4xf32>
    %16 = arith.divf %14, %15 : vector<1x4xf32>
    %17 = vector.shape_cast %16 : vector<1x4xf32> to vector<1x4x1xf32>
    %18 = vector.broadcast %17 : vector<1x4x1xf32> to vector<1x4x16xf32>
    %19 = arith.mulf %0, %18 : vector<1x4x16xf32>
    %c0_14 = arith.constant 0 : index
    %c0_15 = arith.constant 0 : index
    %c0_16 = arith.constant 0 : index
    %20 = vector.load %arg6[%c0_14, %c0_15, %c0_16] : memref<1x4x16xf32, #tpu.memory_space<vmem>>, vector<1x4x16xf32>
    tpu.vector_store %arg6[%c0_14, %c0_15, %c0_16], %19 {strides = array<i32>} : memref<1x4x16xf32, #tpu.memory_space<vmem>>, vector<1x4x16xf32>,
    return
  }
  func.func @transform_0(%arg0: i32) -> (i32, i32, i32) {
    %c0_i32 = arith.constant 0 : i32
    %c0_i32_0 = arith.constant 0 : i32
    %c0_i32_1 = arith.constant 0 : i32
    return %arg0, %c0_i32, %c0_i32_0 : i32, i32, i32
  }
  func.func @transform_1(%arg0: i32) -> (i32, i32) {
    %c0_i32 = arith.constant 0 : i32
    %c0_i32_0 = arith.constant 0 : i32
    %c0_i32_1 = arith.constant 0 : i32
    return %c0_i32, %c0_i32_0 : i32, i32
  }
  func.func @transform_2(%arg0: i32) -> (i32, i32) {
    %c0_i32 = arith.constant 0 : i32
    %c0_i32_0 = arith.constant 0 : i32
    %c0_i32_1 = arith.constant 0 : i32
    return %c0_i32, %c0_i32_0 : i32, i32
  }
  func.func @transform_3(%arg0: i32) -> (i32, i32) {
    %c0_i32 = arith.constant 0 : i32
    %c0_i32_0 = arith.constant 0 : i32
    %c0_i32_1 = arith.constant 0 : i32
    return %c0_i32, %c0_i32_0 : i32, i32
  }
  func.func @transform_4(%arg0: i32) -> (i32, i32) {
    %c0_i32 = arith.constant 0 : i32
    %c0_i32_0 = arith.constant 0 : i32
    %c0_i32_1 = arith.constant 0 : i32
    return %c0_i32, %c0_i32_0 : i32, i32
  }
  func.func @transform_5(%arg0: i32) -> (i32, i32, i32) {
    %c0_i32 = arith.constant 0 : i32
    %c0_i32_0 = arith.constant 0 : i32
    %c0_i32_1 = arith.constant 0 : i32
    return %arg0, %c0_i32, %c0_i32_0 : i32, i32, i32
  }
}

</mosaic_0001>

<llo_original>
// kernel: tpu_custom_call.1
$region0: #{tpu_custom_call.1}
  #allocation0 [shape = 'u32[]', space=smem, size = 0x4, offset = 0x4, fixed_abs, tag = 'smem constant byte address 0x4 - core index']
  #allocation1 [shape = 'u32[72,128]{1,0:T(1,128)}', space=vmem, size = 0x9000, scoped, tag = 'internal scratch']
  #allocation2 [shape = 'f32[1,1]{1,0:T(1,128)S(1)}', space=vmem, size = 0x200, scoped, tag = 'scoped memory for tpu_custom_call.1']
  %s0 = inlined_call_operand.hbm [shape: f32[2,4,16], index: 0, kind: input, shape index: {}]
  %s1 = inlined_call_operand.vmem [shape: f32[4,1], index: 1, kind: input, shape index: {}]
  %s2 = inlined_call_operand.<no memory space> [shape: f32[1,1], index: 2, kind: input, shape index: {}]
  %s3 = inlined_call_operand.vmem [shape: f32[1,4], index: 3, kind: input, shape index: {}]
  %s4 = inlined_call_operand.vmem [shape: f32[1,4], index: 4, kind: input, shape index: {}]
  %s5 = inlined_call_operand.hbm [shape: f32[2,4,16], index: 5, kind: output, shape index: {}]
  %s6 = sld [smem:[#allocation0]]
  $region57: #{tpu_custom_call.1} parent=0
    _
  %s8 = ssub.s32 1, %s6
  %s9 = scalar_select 0, %s8, %s6
  %v10 = vstv %s2
  %11 = vst [vmem:[#allocation2] sm:$0x1] %v10
  $region1: #{tpu_custom_call.1} parent=0
    #allocation3 [shape = 'u8[4096]{0}', space=vmem, size = 0x1000, scoped, tag = 'input window, operand 0']
    #allocation4 [shape = 's32[2]{0}', space=sflag, size = 0x8, scoped, tag = 'scoped memory for tpu_custom_call.1']
    #allocation5 [shape = 's32[2]{0}', space=sflag, size = 0x8, scoped, tag = 'scoped memory for tpu_custom_call.1']
    #allocation6 [shape = 'u8[4096]{0}', space=vmem, size = 0x1000, scoped, tag = 'output window, operand 0']
    %12 = vsyncpa [#allocation4], 0
    %s13 = scalar_lea.sflag [#allocation4], 1
    %14 = vsyncpa %s13, 0
    %15 = vsyncpa [#allocation5], 0
    %s16 = scalar_lea.sflag [#allocation5], 1
    %17 = vsyncpa %s16, 0
    loop: start=0, step=1, limit=4
    $region2: #{tpu_custom_call.1} parent=1 // loop_pre_header
      _
    $region3: #{tpu_custom_call.1} parent=1 // loop_header
      %s19 = sphi 0, %s23
      %p20 = scmp.ge.s32.totalorder %s19, 4
      %s29 = sphi 0, %s31
      %s32 = sphi 0, %s29
      %s33 = sphi 0, %s32
      %s49 = sphi 0, %s33
      %s53 = sphi 0, %s53
      %s55 = sphi 0, %s53
      %s56 = sphi 0, %s55
      %s70 = sphi 0, %s56
      %s74 = sphi 0, %s74
      %s76 = sphi 0, %s74
      %s77 = sphi 0, %s76
      %s91 = sphi 0, %s77
      %s95 = sphi 0, %s95
      %s97 = sphi 0, %s95
      %s98 = sphi 0, %s97
      %s112 = sphi 0, %s98
      %s116 = sphi 0, %s116
      %s118 = sphi 0, %s116
      %s119 = sphi 0, %s118
      %s133 = sphi 0, %s119
      %s139 = sphi 0, %s141
      %s142 = sphi 0, %s139
      %s143 = sphi 0, %s142
      %s159 = sphi 0, %s143
    $region4: #{tpu_custom_call.1} parent=1 // loop_header_branch
      %22 = sbr.rel (%p20) target = $region8
    $region5: #{tpu_custom_call.1} parent=1 // loop_body
      %s24 = ssub.s32 %s19, 1
      %s25 = ssub.s32 %s19, 2
      %s26 = sadd.s32 %s19, 1
      %s27 = ssub.s32 %s19, %s26
      %p28 = scmp.eq.s32.totalorder %s27, 0
      %s30 = sadd.s32 %s29, 1
      %s31 = scalar_select %p28, %s29, %s30
      %p34 = pneg %p28
      %p35 = scmp.eq.s32.totalorder %s19, 1
      %p36 = por %p34, %p35
      %p37 = scmp.ne.s32.totalorder %s29, %s32
      %p38 = scmp.eq.s32.totalorder %s19, 0
      %p39 = por %p37, %p38
      %p40 = scmp.ne.s32.totalorder %s29, %s32
      %p41 = scmp.eq.s32.totalorder %s24, 1
      %p42 = por %p40, %p41
      %p43 = scmp.ne.s32.totalorder %s32, %s33
      %p44 = scmp.eq.s32.totalorder %s24, 0
      %p45 = por %p43, %p44
      %p46 = scmp.ne.s32.totalorder %s32, %s33
      %p47 = scmp.eq.s32.totalorder %s25, 1
      %p48 = por %p46, %p47
      %p50 = scmp.ne.s32.totalorder %s33, %s49
      %p51 = scmp.eq.s32.totalorder %s25, 0
      %p52 = por %p50, %p51
      %s54 = sadd.s32 %s53, 1
      %p57 = scmp.eq.s32.totalorder %s19, 1
      %p58 = scmp.ne.s32.totalorder %s53, %s55
      %p59 = scmp.eq.s32.totalorder %s19, 0
      %p60 = por %p58, %p59
      %p61 = scmp.ne.s32.totalorder %s53, %s55
      %p62 = scmp.eq.s32.totalorder %s24, 1
      %p63 = por %p61, %p62
      %p64 = scmp.ne.s32.totalorder %s55, %s56
      %p65 = scmp.eq.s32.totalorder %s24, 0
      %p66 = por %p64, %p65
      %p67 = scmp.ne.s32.totalorder %s55, %s56
      %p68 = scmp.eq.s32.totalorder %s25, 1
      %p69 = por %p67, %p68
      %p71 = scmp.ne.s32.totalorder %s56, %s70
      %p72 = scmp.eq.s32.totalorder %s25, 0
      %p73 = por %p71, %p72
      %s75 = sadd.s32 %s74, 1
      %p78 = scmp.eq.s32.totalorder %s19, 1
      %p79 = scmp.ne.s32.totalorder %s74, %s76
      %p80 = scmp.eq.s32.totalorder %s19, 0
      %p81 = por %p79, %p80
      %p82 = scmp.ne.s32.totalorder %s74, %s76
      %p83 = scmp.eq.s32.totalorder %s24, 1
      %p84 = por %p82, %p83
      %p85 = scmp.ne.s32.totalorder %s76, %s77
      %p86 = scmp.eq.s32.totalorder %s24, 0
      %p87 = por %p85, %p86
      %p88 = scmp.ne.s32.totalorder %s76, %s77
      %p89 = scmp.eq.s32.totalorder %s25, 1
      %p90 = por %p88, %p89
      %p92 = scmp.ne.s32.totalorder %s77, %s91
      %p93 = scmp.eq.s32.totalorder %s25, 0
      %p94 = por %p92, %p93
      %s96 = sadd.s32 %s95, 1
      %p99 = scmp.eq.s32.totalorder %s19, 1
      %p100 = scmp.ne.s32.totalorder %s95, %s97
      %p101 = scmp.eq.s32.totalorder %s19, 0
      %p102 = por %p100, %p101
      %p103 = scmp.ne.s32.totalorder %s95, %s97
      %p104 = scmp.eq.s32.totalorder %s24, 1
      %p105 = por %p103, %p104
      %p106 = scmp.ne.s32.totalorder %s97, %s98
      %p107 = scmp.eq.s32.totalorder %s24, 0
      %p108 = por %p106, %p107
      %p109 = scmp.ne.s32.totalorder %s97, %s98
      %p110 = scmp.eq.s32.totalorder %s25, 1
      %p111 = por %p109, %p110
      %p113 = scmp.ne.s32.totalorder %s98, %s112
      %p114 = scmp.eq.s32.totalorder %s25, 0
      %p115 = por %p113, %p114
      %s117 = sadd.s32 %s116, 1
      %p120 = scmp.eq.s32.totalorder %s19, 1
      %p121 = scmp.ne.s32.totalorder %s116, %s118
      %p122 = scmp.eq.s32.totalorder %s19, 0
      %p123 = por %p121, %p122
      %p124 = scmp.ne.s32.totalorder %s116, %s118
      %p125 = scmp.eq.s32.totalorder %s24, 1
      %p126 = por %p124, %p125
      %p127 = scmp.ne.s32.totalorder %s118, %s119
      %p128 = scmp.eq.s32.totalorder %s24, 0
      %p129 = por %p127, %p128
      %p130 = scmp.ne.s32.totalorder %s118, %s119
      %p131 = scmp.eq.s32.totalorder %s25, 1
      %p132 = por %p130, %p131
      %p134 = scmp.ne.s32.totalorder %s119, %s133
      %p135 = scmp.eq.s32.totalorder %s25, 0
      %p136 = por %p134, %p135
      %s137 = ssub.s32 %s19, %s26
      %p138 = scmp.eq.s32.totalorder %s137, 0
      %s140 = sadd.s32 %s139, 1
      %s141 = scalar_select %p138, %s139, %s140
      %p144 = pneg %p138
      %p145 = scmp.eq.s32.totalorder %s19, 1
      %p146 = por %p144, %p145
      %p147 = scmp.ne.s32.totalorder %s139, %s142
      %p148 = scmp.eq.s32.totalorder %s19, 0
      %p149 = por %p147, %p148
      %p150 = scmp.ne.s32.totalorder %s139, %s142
      %p151 = scmp.eq.s32.totalorder %s24, 1
      %p152 = por %p150, %p151
      %p153 = scmp.ne.s32.totalorder %s142, %s143
      %p154 = scmp.eq.s32.totalorder %s24, 0
      %p155 = por %p153, %p154
      %p156 = scmp.ne.s32.totalorder %s142, %s143
      %p157 = scmp.eq.s32.totalorder %s25, 1
      %p158 = por %p156, %p157
      %p160 = scmp.ne.s32.totalorder %s143, %s159
      %p161 = scmp.eq.s32.totalorder %s25, 0
      %p162 = por %p160, %p161
      %p163 = scmp.le.s32.totalorder 1, %s19
      %p164 = scmp.lt.s32.totalorder %s19, 3
      %p165 = pnand %p163, %p164
      %p166 = pneg %p165
      // Predicated region
      $region9: #{tpu_custom_call.1} parent=5 // pred_check
        _
      $region10: #{tpu_custom_call.1} parent=5 // pred_check_branch
        %168 = sbr.rel (%p165) target = $region12
      $region11: #{tpu_custom_call.1} parent=5 // pred_region
        %s169 = ssub.s32 %s19, 1
        // Predicated region
        $region13: #{tpu_custom_call.1} parent=11 // pred_check
          %p170 = pneg %p66
        $region14: #{tpu_custom_call.1} parent=11 // pred_check_branch
          %172 = sbr.rel (%p170) target = $region16
        $region15: #{tpu_custom_call.1} parent=11 // pred_region
          _
        $region16: #{tpu_custom_call.1} parent=11 // pred_fallthru
          _
        // Predicated region
        $region17: #{tpu_custom_call.1} parent=11 // pred_check
          %p173 = pneg %p87
        $region18: #{tpu_custom_call.1} parent=11 // pred_check_branch
          %175 = sbr.rel (%p173) target = $region20
        $region19: #{tpu_custom_call.1} parent=11 // pred_region
          _
        $region20: #{tpu_custom_call.1} parent=11 // pred_fallthru
          _
        // Predicated region
        $region21: #{tpu_custom_call.1} parent=11 // pred_check
          %p176 = pneg %p108
        $region22: #{tpu_custom_call.1} parent=11 // pred_check_branch
          %178 = sbr.rel (%p176) target = $region24
        $region23: #{tpu_custom_call.1} parent=11 // pred_region
          _
        $region24: #{tpu_custom_call.1} parent=11 // pred_fallthru
          _
        // Predicated region
        $region25: #{tpu_custom_call.1} parent=11 // pred_check
          %p179 = pneg %p129
        $region26: #{tpu_custom_call.1} parent=11 // pred_check_branch
          %181 = sbr.rel (%p179) target = $region28
        $region27: #{tpu_custom_call.1} parent=11 // pred_region
          _
        $region28: #{tpu_custom_call.1} parent=11 // pred_fallthru
          _
      $region12: #{tpu_custom_call.1} parent=5 // pred_fallthru
        _
      %p182 = scmp.lt.s32.totalorder %s19, 2
      // Predicated region
      $region29: #{tpu_custom_call.1} parent=5 // pred_check
        %p183 = pneg %p182
      $region30: #{tpu_custom_call.1} parent=5 // pred_check_branch
        %185 = sbr.rel (%p183) target = $region32
      $region31: #{tpu_custom_call.1} parent=5 // pred_region
        // Predicated region
        $region33: #{tpu_custom_call.1} parent=31 // pred_check
          %p186 = pneg %p39
        $region34: #{tpu_custom_call.1} parent=31 // pred_check_branch
          %188 = sbr.rel (%p186) target = $region36
        $region35: #{tpu_custom_call.1} parent=31 // pred_region
          %s189 = sand.u32 %s29, 1
          %s190 = scalar_lea.sflag [#allocation4], %s189
          %s191 = sand.u32 %s29, 1
          %s192 = smul.addr %s191, 4
          %s193 = scalar_lea.vmem [#allocation3], %s192
          %195 = vsyncadd %s190, 0
          %s196 = smul.addr %s19, 4
          %s197 = scalar_lea.hbm %s0, %s196
          %s199 = sshll.u32 %s197, 4
          %s200 = int_to_ptr.hbm [resolvable:$true] %s199
          %s201 = sshll.u32 %s193, 4
          %s202 = int_to_ptr.vmem [resolvable:$true] %s201
          %204 = dma.hbm_to_vmem [thread:$0]  %s200, 64, %s202, %s190
        $region36: #{tpu_custom_call.1} parent=31 // pred_fallthru
          _
      $region32: #{tpu_custom_call.1} parent=5 // pred_fallthru
        _
      %p205 = scmp.le.s32.totalorder 1, %s19
      %p206 = scmp.lt.s32.totalorder %s19, 3
      %p207 = pnand %p205, %p206
      %p208 = pneg %p207
      // Predicated region
      $region37: #{tpu_custom_call.1} parent=5 // pred_check
        _
      $region38: #{tpu_custom_call.1} parent=5 // pred_check_branch
        %210 = sbr.rel (%p207) target = $region40
      $region39: #{tpu_custom_call.1} parent=5 // pred_region
        %s211 = ssub.s32 %s19, 1
        %s212 = sand.u32 %s32, 1
        %s213 = scalar_lea.sflag [#allocation4], %s212
        %s214 = sand.u32 %s32, 1
        %s215 = smul.addr %s214, 4
        %s216 = scalar_lea.vmem [#allocation3], %s215
        // Predicated region
        $region41: #{tpu_custom_call.1} parent=39 // pred_check
          %p217 = pneg %p45
        $region42: #{tpu_custom_call.1} parent=39 // pred_check_branch
          %219 = sbr.rel (%p217) target = $region44
        $region43: #{tpu_custom_call.1} parent=39 // pred_region
          %221 = dma.done %s213, 64
        $region44: #{tpu_custom_call.1} parent=39 // pred_fallthru
          _
        %s222 = sand.u32 %s32, 1
        %s223 = scalar_lea.sflag [#allocation4], %s222
        %s224 = sand.u32 %s32, 1
        %s225 = smul.addr %s224, 4
        %s226 = scalar_lea.vmem [#allocation3], %s225
        %p227 = pneg %p45
        %p228 = pneg %p42
        %p229 = pneg %p66
        %p230 = pneg %p63
        %p231 = pneg %p87
        %p232 = pneg %p84
        %p233 = pneg %p108
        %p234 = pneg %p105
        %p235 = pneg %p129
        %p236 = pneg %p126
        %p237 = pneg %p155
        %p238 = pneg %p152
        %s239 = sand.u32 %s142, 1
        %s240 = scalar_lea.sflag [#allocation5], %s239
        %s241 = sand.u32 %s142, 1
        %s242 = smul.addr %s241, 4
        %s243 = scalar_lea.vmem [#allocation6], %s242
        %v244 = vld [vmem:[%s216] sm:$0xf]
        %vm245 = vcmask 125952
        %v246 = vsel %vm245, %v244, 0.0
        %247 = vadd.xlane.f32.xlu0 %v246
        %v248 = vpop.xlane.xlu0 %247
        %v249 = vld [vmem:[%s1] sm:$0xf]
        %v250 = vld [vmem:[#allocation2] sm:$0x1]
        %v252 = vlaneseq
        %v253 = vand.u32 %v252, 127
        %v254 = vperm.slane %v248, %v253
        %vm255 = vcmask 31744
        %v256 = vsel %vm255, %v254, 0
        %vm258 = vcmask 1043456
        %v260 = vsel %vm258, %v249, 0
        %262 = vmatpush.msra.mxu0 0.0
        %263 = vmatpush.msra.mxu0 0.0
        %264 = vmatpush.msra.mxu0 0.0
        %265 = vmatpush.msra.mxu0 0.0
        %266 = vmatpush.msra.mxu0 0.0
        %267 = vmatpush.msra.mxu0 0.0
        %268 = vmatpush.msra.mxu0 0.0
        %269 = vmatpush.msra.mxu0 0.0
        %270 = vmatpush.msra.mxu0 0.0
        %271 = vmatpush.msra.mxu0 0.0
        %272 = vmatpush.msra.mxu0 0.0
        %273 = vmatpush.msra.mxu0 0.0
        %274 = vmatpush.msra.mxu0 0.0
        %275 = vmatpush.msra.mxu0 0.0
        %276 = vmatpush.msra.mxu0 0.0
        %277 = vmatpush.msra.mxu0 %v260
        %278 = vmatmul.f32.gmra.mxu0 %v256
        %v279 = vpop.f32.mrf.mxu0
        %v280 = vadd.f32 %v250, %v279
        %281 = vdwg.mxu0
        %v282 = vmax.f32 %v280, 0.0
        %v283 = vld [vmem:[%s3] sm:$0x1]
        %v284 = vld [vmem:[%s4] sm:$0x1]
        %vm285 = vcmask 7168
        %v287 = vsel %vm285, %v282, 0
        %vm289 = vcmask 1040384
        %v291 = vsel %vm289, %v283, 0
        %293 = vmatpush.msra.mxu0 0.0
        %294 = vmatpush.msra.mxu0 0.0
        %295 = vmatpush.msra.mxu0 0.0
        %296 = vmatpush.msra.mxu0 0.0
        %297 = vmatpush.msra.mxu0 0.0
        %298 = vmatpush.msra.mxu0 0.0
        %299 = vmatpush.msra.mxu0 0.0
        %300 = vmatpush.msra.mxu0 0.0
        %301 = vmatpush.msra.mxu0 0.0
        %302 = vmatpush.msra.mxu0 0.0
        %303 = vmatpush.msra.mxu0 0.0
        %304 = vmatpush.msra.mxu0 0.0
        %305 = vmatpush.msra.mxu0 0.0
        %306 = vmatpush.msra.mxu0 0.0
        %307 = vmatpush.msra.mxu0 0.0
        %308 = vmatpush.msra.mxu0 %v291
        %309 = vmatmul.f32.gmra.mxu0 %v287
        %v310 = vpop.f32.mrf.mxu0
        %v311 = vadd.f32 %v284, %v310
        %312 = vdwg.mxu0
        %v313 = vxor.u32 %v311, 2147483648
        %v314 = vmul.f32 %v313, 1.442695
        %v315 = vpow.pop %v314
        %v316 = vadd.f32 %v315, 1.0
        %v317 = vrcp.pop %v316
        %v318 = vmul.f32 %v316, %v317
        %v319 = vsub.f32 1.0, %v318
        %v320 = vmul.f32 %v317, %v319
        %v321 = vadd.f32 %v317, %v320
        %vm322 = vweird.f32 %v316
        %vm323 = vweird.f32 %v317
        %vm324 = vmor %vm322, %vm323
        %v325 = vsel %vm324, %v317, %v321
        %v326 = vand.u32 2147483647, %v316
        %vm327 = vcmp.eq.f32.partialorder %v326, 8.507059e+37
        %v328 = vand.u32 %v316, 2147483648
        %v329 = vor.u32 1.1754944e-38, %v328
        %v330 = vsel %vm327, %v329, %v325
        %v331 = vmul.f32 1.0, %v330
        %v332 = vperm.slane %v331, 0
        %v333 = vlaneseq
        %v334 = vshrl.u32 %v333, 7
        %336 = vset.pattern.permute.xlu0 %v334
        %337 = vperm.xlu0 %336, %v332
        %v338 = vpop.permute.xlu0 %337
        %v339 = vmul.f32 %v244, %v338
        %340 = vst.msk [vmem:[%s243] sm:$0xf] %vm245, %v339
        %s341 = sand.u32 %s142, 1
        %s342 = scalar_lea.sflag [#allocation5], %s341
        %s343 = sand.u32 %s142, 1
        %s344 = smul.addr %s343, 4
        %s345 = scalar_lea.vmem [#allocation6], %s344
        // Predicated region
        $region45: #{tpu_custom_call.1} parent=39 // pred_check
          %p346 = pneg %p152
        $region46: #{tpu_custom_call.1} parent=39 // pred_check_branch
          %348 = sbr.rel (%p346) target = $region48
        $region47: #{tpu_custom_call.1} parent=39 // pred_region
          %350 = vsyncadd %s342, 0
          %s351 = smul.addr %s24, 4
          %s352 = scalar_lea.hbm %s5, %s351
          %s354 = sshll.u32 %s345, 4
          %s355 = int_to_ptr.vmem [resolvable:$true] %s354
          %s356 = sshll.u32 %s352, 4
          %s357 = int_to_ptr.hbm [resolvable:$true] %s356
          %359 = dma.vmem_to_hbm [thread:$0]  %s355, 64, %s357, %s342
        $region48: #{tpu_custom_call.1} parent=39 // pred_fallthru
          _
      $region40: #{tpu_custom_call.1} parent=5 // pred_fallthru
        _
      %p360 = scmp.le.s32.totalorder 2, %s19
      // Predicated region
      $region49: #{tpu_custom_call.1} parent=5 // pred_check
        %p361 = pneg %p360
      $region50: #{tpu_custom_call.1} parent=5 // pred_check_branch
        %363 = sbr.rel (%p361) target = $region52
      $region51: #{tpu_custom_call.1} parent=5 // pred_region
        %s364 = ssub.s32 %s19, 2
        // Predicated region
        $region53: #{tpu_custom_call.1} parent=51 // pred_check
          %p365 = pneg %p158
        $region54: #{tpu_custom_call.1} parent=51 // pred_check_branch
          %367 = sbr.rel (%p365) target = $region56
        $region55: #{tpu_custom_call.1} parent=51 // pred_region
          %s368 = sand.u32 %s143, 1
          %s369 = scalar_lea.sflag [#allocation5], %s368
          %s370 = sand.u32 %s143, 1
          %s371 = smul.addr %s370, 4
          %s372 = scalar_lea.vmem [#allocation6], %s371
          %374 = dma.done %s369, 64
        $region56: #{tpu_custom_call.1} parent=51 // pred_fallthru
          _
      $region52: #{tpu_custom_call.1} parent=5 // pred_fallthru
        _
    $region6: #{tpu_custom_call.1} parent=1 // loop_footer
      %s23 = sadd.s32 1, %s19
    $region7: #{tpu_custom_call.1} parent=1 // loop_footer_branch
      %18 = sbr.rel target = $region3
    $region8: #{tpu_custom_call.1} parent=1 // loop_exit
      _
    %375 = vsyncpa [#allocation4], 1
    %s376 = scalar_lea.sflag [#allocation4], 1
    %377 = vsyncpa %s376, 1
    %378 = vsyncpa [#allocation5], 1
    %s379 = scalar_lea.sflag [#allocation5], 1
    %380 = vsyncpa %s379, 1

</llo_original>
